<compile_context>
chip_gen: v5e
topology: v5e:2x2
jax: 0.10.0
libtpu: 0.0.40
codegen_flags: <defaults>
</compile_context>

<pallas_src>
import jax
import jax.numpy as jnp
from jax import lax
from jax.experimental import pallas as pl
from jax.experimental.pallas import tpu as pltpu

PAD_ID = 1  # attention_mask = ids.ne(1) in the PyTorch module


# ----------------------------- Pallas kernel ------------------------------- #

def fused_forward_kernel(cc_ref, cn_ref, emb_ref, w_ref, b_ref,
                         code_out_ref, nl_out_ref, loss_ref):
    """Whole forward pass in one grid step (everything VMEM-resident).

    cc_ref / cn_ref : (B, V) f32 row-normalized masked token counts
                      (code / nl) -- counts @ table == masked mean pool.
    emb_ref         : (2, V, H) f32 embedding tables   (0 = code, 1 = nl)
    w_ref           : (2, H, H) f32 pooler weights
    b_ref           : (2, 1, H) f32 pooler biases
    code_out_ref    : (B, H) f32   tanh(code_pooled @ W0 + b0)
    nl_out_ref      : (B, H) f32   tanh(nl_pooled   @ W1 + b1)
    loss_ref        : (1, 1) f32   mean InfoNCE loss
    """
    # ---- code encoder: MXU matmuls + EUP tanh ----
    code_pooled = jnp.dot(cc_ref[...], emb_ref[0],
                          preferred_element_type=jnp.float32)          # (B, H)
    code_vec = jnp.tanh(jnp.dot(code_pooled, w_ref[0],
                                preferred_element_type=jnp.float32) + b_ref[0])
    code_out_ref[...] = code_vec

    # ---- nl encoder ----
    nl_pooled = jnp.dot(cn_ref[...], emb_ref[1],
                        preferred_element_type=jnp.float32)            # (B, H)
    nl_vec = jnp.tanh(jnp.dot(nl_pooled, w_ref[1],
                              preferred_element_type=jnp.float32) + b_ref[1])
    nl_out_ref[...] = nl_vec

    # ---- contrastive loss: scores = nl @ code^T, CE vs arange(B) (mean) ----
    scores = lax.dot_general(nl_vec, code_vec, (((1,), (1,)), ((), ())),
                             preferred_element_type=jnp.float32)       # (B, B)
    # Positive logit of row q is <nl[q], code[q]>: direct row-wise dot, no
    # iota/where diagonal extraction.
    pos = jnp.sum(nl_vec * code_vec, axis=-1, keepdims=True)           # (B, 1)
    m = jnp.max(scores, axis=-1, keepdims=True)
    lse = m + jnp.log(jnp.sum(jnp.exp(scores - m), axis=-1, keepdims=True))
    bs = scores.shape[0]
    loss_ref[...] = jnp.sum(lse - pos, keepdims=True) / bs             # (1, 1)


# ------------------------------ wrappers ----------------------------------- #

def pooled_counts(ids, vocab):
    """(B, S) int32 ids -> (B, V) f32 row-normalized masked token counts.

    counts @ table reproduces the masked mean pool of the embedding lookup, so
    the Pallas kernel stays pure MXU (no in-kernel one-hot, gather or divide).
    """
    counts = jnp.sum(jax.nn.one_hot(ids, vocab, dtype=jnp.float32), axis=1)
    counts = counts.at[:, PAD_ID].set(0.0)          # attention_mask = ids.ne(1)
    denom = jnp.maximum(jnp.sum(counts, axis=1, keepdims=True), 1.0)
    return counts / denom


def fused_forward(counts_code, counts_nl, emb, w, b):
    B, _ = counts_code.shape
    H = emb.shape[-1]
    vmem = lambda: pl.BlockSpec(memory_space=pltpu.MemorySpace.VMEM)
    return pl.pallas_call(
        fused_forward_kernel,
        out_shape=(jax.ShapeDtypeStruct((B, H), jnp.float32),
                   jax.ShapeDtypeStruct((B, H), jnp.float32),
                   jax.ShapeDtypeStruct((1, 1), jnp.float32)),
        in_specs=[vmem() for _ in range(5)],
        out_specs=(vmem(), vmem(), vmem()),
    )(counts_code, counts_nl, emb, w, b)


def init_params(key, vocab=128, hidden=128):
    """Stacked params: index 0 = code encoder, index 1 = nl encoder."""
    ks = jax.random.split(key, 4)
    s = 0.02
    emb = jnp.stack([jax.random.normal(ks[0], (vocab, hidden)),
                     jax.random.normal(ks[1], (vocab, hidden))]) * s
    w = jnp.stack([jax.random.normal(ks[2], (hidden, hidden)),
                   jax.random.normal(ks[3], (hidden, hidden))]) * s
    return {"emb": emb.astype(jnp.float32),
            "w": w.astype(jnp.float32),
            "b": jnp.zeros((2, 1, hidden), jnp.float32)}


def forward(params, code_inputs, nl_inputs, return_vec=False):
    vocab = params["emb"].shape[1]
    counts_code = pooled_counts(code_inputs.astype(jnp.int32), vocab)
    counts_nl = pooled_counts(nl_inputs.astype(jnp.int32), vocab)
    code_vec, nl_vec, loss = fused_forward(
        counts_code, counts_nl, params["emb"], params["w"], params["b"])
    if return_vec:
        return code_vec, nl_vec
    return loss[0, 0], code_vec, nl_vec


# -------------------------- pure-JAX reference ----------------------------- #

def ref_forward(params, code_inputs, nl_inputs):
    def enc(ids, table, w, b):
        mask = (ids != PAD_ID).astype(jnp.float32)[..., None]
        emb = jnp.take(table, ids, axis=0)
        pooled = jnp.sum(emb * mask, axis=1) / jnp.maximum(jnp.sum(mask, axis=1), 1.0)
        return jnp.tanh(pooled @ w + b)

    code_vec = enc(code_inputs, params["emb"][0], params["w"][0], params["b"][0])
    nl_vec = enc(nl_inputs, params["emb"][1], params["w"][1], params["b"][1])
    scores = (nl_vec[:, None, :] * code_vec[None, :, :]).sum(-1)
    B = scores.shape[0]
    logp = jax.nn.log_softmax(scores, axis=-1)
    loss = -jnp.mean(logp[jnp.arange(B), jnp.arange(B)])
    return loss, code_vec, nl_vec


# --------------------------------- main ------------------------------------ #

if __name__ == "__main__":
    B, S, VOCAB, H = 16, 16, 128, 128
    key = jax.random.PRNGKey(0)
    kp, kc, kn = jax.random.split(key, 3)

    params = init_params(kp, vocab=VOCAB, hidden=H)

    # token ids in [2, VOCAB); last few positions padded with PAD_ID (=1)
    code_inputs = jax.random.randint(kc, (B, S), 2, VOCAB, dtype=jnp.int32)
    nl_inputs = jax.random.randint(kn, (B, S), 2, VOCAB, dtype=jnp.int32)
    code_inputs = code_inputs.at[:, S - 3:].set(PAD_ID)
    nl_inputs = nl_inputs.at[:, S - 2:].set(PAD_ID)

    loss, code_vec, nl_vec = forward(params, code_inputs, nl_inputs)
    jax.block_until_ready((loss, code_vec, nl_vec))

    ref_loss, ref_code, ref_nl = ref_forward(params, code_inputs, nl_inputs)
    assert jnp.allclose(code_vec, ref_code, atol=1e-5, rtol=1e-5)
    assert jnp.allclose(nl_vec, ref_nl, atol=1e-5, rtol=1e-5)
    assert jnp.allclose(loss, ref_loss, atol=1e-5, rtol=1e-5)

    # return_vec=True path of the original module
    cv, nv = forward(params, code_inputs, nl_inputs, return_vec=True)
    assert jnp.allclose(cv, ref_code, atol=1e-5, rtol=1e-5)
    assert jnp.allclose(nv, ref_nl, atol=1e-5, rtol=1e-5)

    print("KERNEL_OK")
</pallas_src>

<mosaic_0001>
module attributes {stable_mosaic.version = 11 : i64} {
  func.func @fused_forward_kernel(%arg0: memref<16x128xf32, #tpu.memory_space<vmem>>, %arg1: memref<16x128xf32, #tpu.memory_space<vmem>>, %arg2: memref<2x128x128xf32, #tpu.memory_space<vmem>>, %arg3: memref<2x128x128xf32, #tpu.memory_space<vmem>>, %arg4: memref<2x1x128xf32, #tpu.memory_space<vmem>>, %arg5: memref<16x128xf32, #tpu.memory_space<vmem>>, %arg6: memref<16x128xf32, #tpu.memory_space<vmem>>, %arg7: memref<1x1xf32, #tpu.memory_space<vmem>>) attributes {dimension_semantics = [], scalar_prefetch = 0 : i64, scratch_operands = 0 : i64, tpu.core_type = #tpu.core_type<tc>} {
    %c0 = arith.constant 0 : index
    %c0_0 = arith.constant 0 : index
    %0 = vector.load %arg0[%c0, %c0_0] : memref<16x128xf32, #tpu.memory_space<vmem>>, vector<16x128xf32>
    %c0_1 = arith.constant 0 : index
    %c0_2 = arith.constant 0 : index
    %c0_3 = arith.constant 0 : index
    %1 = vector.load %arg2[%c0_1, %c0_2, %c0_3] : memref<2x128x128xf32, #tpu.memory_space<vmem>>, vector<1x128x128xf32>
    %2 = vector.shape_cast %1 : vector<1x128x128xf32> to vector<128x128xf32>
    %cst = arith.constant dense<0.000000e+00> : vector<16x128xf32>
    %3 = tpu.matmul %0, %2, %cst {dimension_numbers = #tpu.dot_dimension_numbers<[1], [0], [0], [1], [0, 0, 1, 1], [], []>} : vector<16x128xf32>, vector<128x128xf32>, vector<16x128xf32> -> vector<16x128xf32>
    %c0_4 = arith.constant 0 : index
    %c0_5 = arith.constant 0 : index
    %c0_6 = arith.constant 0 : index
    %4 = vector.load %arg3[%c0_4, %c0_5, %c0_6] : memref<2x128x128xf32, #tpu.memory_space<vmem>>, vector<1x128x128xf32>
    %5 = vector.shape_cast %4 : vector<1x128x128xf32> to vector<128x128xf32>
    %cst_7 = arith.constant dense<0.000000e+00> : vector<16x128xf32>
    %6 = tpu.matmul %3, %5, %cst_7 {dimension_numbers = #tpu.dot_dimension_numbers<[1], [0], [0], [1], [0, 0, 1, 1], [], []>} : vector<16x128xf32>, vector<128x128xf32>, vector<16x128xf32> -> vector<16x128xf32>
    %c0_8 = arith.constant 0 : index
    %c0_9 = arith.constant 0 : index
    %c0_10 = arith.constant 0 : index
    %7 = vector.load %arg4[%c0_8, %c0_9, %c0_10] : memref<2x1x128xf32, #tpu.memory_space<vmem>>, vector<1x1x128xf32>
    %8 = vector.shape_cast %7 : vector<1x1x128xf32> to vector<1x128xf32>
    %9 = vector.broadcast %8 : vector<1x128xf32> to vector<16x128xf32>
    %10 = arith.addf %6, %9 : vector<16x128xf32>
    %11 = math.tanh %10 : vector<16x128xf32>
    %c0_11 = arith.constant 0 : index
    %c0_12 = arith.constant 0 : index
    %12 = vector.load %arg5[%c0_11, %c0_12] : memref<16x128xf32, #tpu.memory_space<vmem>>, vector<16x128xf32>
    tpu.vector_store %arg5[%c0_11, %c0_12], %11 {strides = array<i32>} : memref<16x128xf32, #tpu.memory_space<vmem>>, vector<16x128xf32>,
    %c0_13 = arith.constant 0 : index
    %c0_14 = arith.constant 0 : index
    %13 = vector.load %arg1[%c0_13, %c0_14] : memref<16x128xf32, #tpu.memory_space<vmem>>, vector<16x128xf32>
    %c1 = arith.constant 1 : index
    %c0_15 = arith.constant 0 : index
    %c0_16 = arith.constant 0 : index
    %14 = vector.load %arg2[%c1, %c0_15, %c0_16] : memref<2x128x128xf32, #tpu.memory_space<vmem>>, vector<1x128x128xf32>
    %15 = vector.shape_cast %14 : vector<1x128x128xf32> to vector<128x128xf32>
    %cst_17 = arith.constant dense<0.000000e+00> : vector<16x128xf32>
    %16 = tpu.matmul %13, %15, %cst_17 {dimension_numbers = #tpu.dot_dimension_numbers<[1], [0], [0], [1], [0, 0, 1, 1], [], []>} : vector<16x128xf32>, vector<128x128xf32>, vector<16x128xf32> -> vector<16x128xf32>
    %c1_18 = arith.constant 1 : index
    %c0_19 = arith.constant 0 : index
    %c0_20 = arith.constant 0 : index
    %17 = vector.load %arg3[%c1_18, %c0_19, %c0_20] : memref<2x128x128xf32, #tpu.memory_space<vmem>>, vector<1x128x128xf32>
    %18 = vector.shape_cast %17 : vector<1x128x128xf32> to vector<128x128xf32>
    %cst_21 = arith.constant dense<0.000000e+00> : vector<16x128xf32>
    %19 = tpu.matmul %16, %18, %cst_21 {dimension_numbers = #tpu.dot_dimension_numbers<[1], [0], [0], [1], [0, 0, 1, 1], [], []>} : vector<16x128xf32>, vector<128x128xf32>, vector<16x128xf32> -> vector<16x128xf32>
    %c1_22 = arith.constant 1 : index
    %c0_23 = arith.constant 0 : index
    %c0_24 = arith.constant 0 : index
    %20 = vector.load %arg4[%c1_22, %c0_23, %c0_24] : memref<2x1x128xf32, #tpu.memory_space<vmem>>, vector<1x1x128xf32>
    %21 = vector.shape_cast %20 : vector<1x1x128xf32> to vector<1x128xf32>
    %22 = vector.broadcast %21 : vector<1x128xf32> to vector<16x128xf32>
    %23 = arith.addf %19, %22 : vector<16x128xf32>
    %24 = math.tanh %23 : vector<16x128xf32>
    %c0_25 = arith.constant 0 : index
    %c0_26 = arith.constant 0 : index
    %25 = vector.load %arg6[%c0_25, %c0_26] : memref<16x128xf32, #tpu.memory_space<vmem>>, vector<16x128xf32>
    tpu.vector_store %arg6[%c0_25, %c0_26], %24 {strides = array<i32>} : memref<16x128xf32, #tpu.memory_space<vmem>>, vector<16x128xf32>,
    %cst_27 = arith.constant dense<0.000000e+00> : vector<16x16xf32>
    %26 = tpu.matmul %24, %11, %cst_27 {dimension_numbers = #tpu.dot_dimension_numbers<[1], [1], [0], [0], [0, 0, 1, 0], [], []>} : vector<16x128xf32>, vector<16x128xf32>, vector<16x16xf32> -> vector<16x16xf32>
    %27 = arith.mulf %24, %11 : vector<16x128xf32>
    %cst_28 = arith.constant dense<0.000000e+00> : vector<16xf32>
    %28 = vector.multi_reduction <add>, %27, %cst_28 [1] : vector<16x128xf32> to vector<16xf32>
    %29 = vector.shape_cast %28 : vector<16xf32> to vector<16x1xf32>
    %cst_29 = arith.constant dense<0xFF800000> : vector<16xf32>
    %30 = vector.multi_reduction <maximumf>, %26, %cst_29 [1] : vector<16x16xf32> to vector<16xf32>
    %31 = vector.shape_cast %30 : vector<16xf32> to vector<16x1xf32>
    %32 = vector.broadcast %31 : vector<16x1xf32> to vector<16x16xf32>
    %33 = arith.subf %26, %32 : vector<16x16xf32>
    %34 = math.exp %33 : vector<16x16xf32>
    %cst_30 = arith.constant dense<0.000000e+00> : vector<16xf32>
    %35 = vector.multi_reduction <add>, %34, %cst_30 [1] : vector<16x16xf32> to vector<16xf32>
    %36 = vector.shape_cast %35 : vector<16xf32> to vector<16x1xf32>
    %37 = math.log %36 : vector<16x1xf32>
    %38 = arith.addf %31, %37 : vector<16x1xf32>
    %39 = arith.subf %38, %29 : vector<16x1xf32>
    %40 = vector.shape_cast %39 : vector<16x1xf32> to vector<1x16x1xf32>
    %cst_31 = arith.constant dense<0.000000e+00> : vector<1xf32>
    %41 = vector.multi_reduction <add>, %40, %cst_31 [1, 2] : vector<1x16x1xf32> to vector<1xf32>
    %42 = vector.shape_cast %41 : vector<1xf32> to vector<1x1x1xf32>
    %43 = vector.extract %42[0, 0, 0] : f32 from vector<1x1x1xf32>
    %44 = vector.broadcast %43 : f32 to vector<1x1xf32>
    %cst_32 = arith.constant 1.600000e+01 : f32
    %45 = vector.broadcast %cst_32 : f32 to vector<1x1xf32>
    %46 = arith.divf %44, %45 : vector<1x1xf32>
    %c0_33 = arith.constant 0 : index
    %c0_34 = arith.constant 0 : index
    %47 = vector.load %arg7[%c0_33, %c0_34] : memref<1x1xf32, #tpu.memory_space<vmem>>, vector<1x1xf32>
    tpu.vector_store %arg7[%c0_33, %c0_34], %46 {strides = array<i32>} : memref<1x1xf32, #tpu.memory_space<vmem>>, vector<1x1xf32>,
    return
  }
}

</mosaic_0001>

<llo_original>
// kernel: tpu_custom_call.1
$region0: #{tpu_custom_call.1}
  #allocation0 [shape = 'u32[]', space=smem, size = 0x4, offset = 0x4, fixed_abs, tag = 'smem constant byte address 0x4 - core index']
  #allocation1 [shape = 'u32[72,128]{1,0:T(1,128)}', space=vmem, size = 0x9000, scoped, tag = 'internal scratch']
  %s0 = inlined_call_operand.hbm [shape: f32[16,128], index: 0, kind: input, shape index: {}]
  %s1 = inlined_call_operand.hbm [shape: f32[16,128], index: 1, kind: input, shape index: {}]
  %s2 = inlined_call_operand.hbm [shape: f32[2,128,128], index: 2, kind: input, shape index: {}]
  %s3 = inlined_call_operand.hbm [shape: f32[2,128,128], index: 3, kind: input, shape index: {}]
  %s4 = inlined_call_operand.vmem [shape: f32[2,1,128], index: 4, kind: input, shape index: {}]
  %s5 = inlined_call_operand.hbm [shape: f32[16,128], index: 5, kind: output, shape index: {0}]
  %s6 = inlined_call_operand.hbm [shape: f32[16,128], index: 6, kind: output, shape index: {1}]
  %s7 = inlined_call_operand.hbm [shape: f32[1,1], index: 7, kind: output, shape index: {2}]
  %8 = xla_tuple %s5, %s6, %s7
  %s9 = sld [smem:[#allocation0]]
  $region62: #{tpu_custom_call.1} parent=0
    _
  %s11 = ssub.s32 1, %s9
  %s12 = scalar_select 0, %s11, %s9
  $region1: #{tpu_custom_call.1} parent=0
    #allocation2 [shape = 'u8[8192]{0}', space=vmem, size = 0x2000, scoped, tag = 'input window, operand 0, single buffered']
    #allocation3 [shape = 's32[1]{0}', space=sflag, size = 0x4, scoped, tag = 'scoped memory for tpu_custom_call.1']
    #allocation4 [shape = 's32[1]{0}', space=sflag, size = 0x4, scoped, tag = 'scoped memory for tpu_custom_call.1']
    #allocation5 [shape = 'u8[8192]{0}', space=vmem, size = 0x2000, scoped, tag = 'input window, operand 1, single buffered']
    #allocation6 [shape = 's32[1]{0}', space=sflag, size = 0x4, scoped, tag = 'scoped memory for tpu_custom_call.1']
    #allocation7 [shape = 'u8[131072]{0}', space=vmem, size = 0x20000, scoped, tag = 'input window, operand 2, single buffered']
    #allocation8 [shape = 'u8[131072]{0}', space=vmem, size = 0x20000, scoped, tag = 'input window, operand 3, single buffered']
    #allocation9 [shape = 's32[1]{0}', space=sflag, size = 0x4, scoped, tag = 'scoped memory for tpu_custom_call.1']
    #allocation10 [shape = 'u8[8192]{0}', space=vmem, size = 0x2000, scoped, tag = 'output window, operand 0, single buffered']
    #allocation11 [shape = 'u8[8192]{0}', space=vmem, size = 0x2000, scoped, tag = 'output window, operand 1, single buffered']
    #allocation12 [shape = 's32[1]{0}', space=sflag, size = 0x4, scoped, tag = 'scoped memory for tpu_custom_call.1']
    #allocation13 [shape = 'u8[512]{0}', space=vmem, size = 0x400, scoped, tag = 'output window, operand 2, single buffered']
    %13 = vsyncpa [#allocation3], 0
    %14 = vsyncpa [#allocation6], 0
    %15 = vsyncpa [#allocation9], 0
    %16 = vsyncpa [#allocation4], 0
    %17 = vsyncpa [#allocation12], 0
    // Predicated region
    $region2: #{tpu_custom_call.1} parent=1 // pred_check
      _
    $region3: #{tpu_custom_call.1} parent=1 // pred_check_branch
      %19 = sbr.rel (0) target = $region5
    $region4: #{tpu_custom_call.1} parent=1 // pred_region
      %21 = vsyncadd [#allocation3], 0
      %s22 = sshll.u32 %s0, 4
      %s23 = int_to_ptr.hbm [resolvable:$true] %s22
      %s24 = sshll.u32 [#allocation2], 4
      %s25 = int_to_ptr.vmem [resolvable:$true] %s24
      %30 = dma.hbm_to_vmem [thread:$0]  %s23, 256, %s25, [#allocation3], 128, 128, 8
    $region5: #{tpu_custom_call.1} parent=1 // pred_fallthru
      _
    // Predicated region
    $region6: #{tpu_custom_call.1} parent=1 // pred_check
      _
    $region7: #{tpu_custom_call.1} parent=1 // pred_check_branch
      %32 = sbr.rel (0) target = $region9
    $region8: #{tpu_custom_call.1} parent=1 // pred_region
      %34 = vsyncadd [#allocation6], 0
      %s35 = sshll.u32 %s1, 4
      %s36 = int_to_ptr.hbm [resolvable:$true] %s35
      %s37 = sshll.u32 [#allocation5], 4
      %s38 = int_to_ptr.vmem [resolvable:$true] %s37
      %43 = dma.hbm_to_vmem [thread:$0]  %s36, 256, %s38, [#allocation6], 128, 128, 8
    $region9: #{tpu_custom_call.1} parent=1 // pred_fallthru
      _
    // Predicated region
    $region10: #{tpu_custom_call.1} parent=1 // pred_check
      _
    $region11: #{tpu_custom_call.1} parent=1 // pred_check_branch
      %45 = sbr.rel (0) target = $region13
    $region12: #{tpu_custom_call.1} parent=1 // pred_region
      %47 = vsyncadd [#allocation6], 0
      %s48 = sshll.u32 %s2, 4
      %s49 = int_to_ptr.hbm [resolvable:$true] %s48
      %s50 = sshll.u32 [#allocation7], 4
      %s51 = int_to_ptr.vmem [resolvable:$true] %s50
      %56 = dma.hbm_to_vmem [thread:$0]  %s49, 4096, %s51, [#allocation6], 128, 128, 8
    $region13: #{tpu_custom_call.1} parent=1 // pred_fallthru
      _
    // Predicated region
    $region14: #{tpu_custom_call.1} parent=1 // pred_check
      _
    $region15: #{tpu_custom_call.1} parent=1 // pred_check_branch
      %58 = sbr.rel (0) target = $region17
    $region16: #{tpu_custom_call.1} parent=1 // pred_region
      %60 = vsyncadd [#allocation9], 0
      %s61 = sshll.u32 %s3, 4
      %s62 = int_to_ptr.hbm [resolvable:$true] %s61
      %s63 = sshll.u32 [#allocation8], 4
      %s64 = int_to_ptr.vmem [resolvable:$true] %s63
      %69 = dma.hbm_to_vmem [thread:$0]  %s62, 4096, %s64, [#allocation9], 128, 128, 8
    $region17: #{tpu_custom_call.1} parent=1 // pred_fallthru
      _
    // Predicated region
    $region18: #{tpu_custom_call.1} parent=1 // pred_check
      _
    $region19: #{tpu_custom_call.1} parent=1 // pred_check_branch
      %71 = sbr.rel (0) target = $region21
    $region20: #{tpu_custom_call.1} parent=1 // pred_region
      _
    $region21: #{tpu_custom_call.1} parent=1 // pred_fallthru
      _
    // Predicated region
    $region22: #{tpu_custom_call.1} parent=1 // pred_check
      _
    $region23: #{tpu_custom_call.1} parent=1 // pred_check_branch
      %73 = sbr.rel (0) target = $region25
    $region24: #{tpu_custom_call.1} parent=1 // pred_region
      %75 = dma.done [#allocation3], 256
    $region25: #{tpu_custom_call.1} parent=1 // pred_fallthru
      _
    // Predicated region
    $region26: #{tpu_custom_call.1} parent=1 // pred_check
      _
    $region27: #{tpu_custom_call.1} parent=1 // pred_check_branch
      %77 = sbr.rel (0) target = $region29
    $region28: #{tpu_custom_call.1} parent=1 // pred_region
      %79 = dma.done [#allocation6], 256
    $region29: #{tpu_custom_call.1} parent=1 // pred_fallthru
      _
    // Predicated region
    $region30: #{tpu_custom_call.1} parent=1 // pred_check
      _
    $region31: #{tpu_custom_call.1} parent=1 // pred_check_branch
      %81 = sbr.rel (0) target = $region33
    $region32: #{tpu_custom_call.1} parent=1 // pred_region
      %83 = dma.done [#allocation6], 4096
    $region33: #{tpu_custom_call.1} parent=1 // pred_fallthru
      _
    // Predicated region
    $region34: #{tpu_custom_call.1} parent=1 // pred_check
      _
    $region35: #{tpu_custom_call.1} parent=1 // pred_check_branch
      %85 = sbr.rel (0) target = $region37
    $region36: #{tpu_custom_call.1} parent=1 // pred_region
      %87 = dma.done [#allocation9], 4096
    $region37: #{tpu_custom_call.1} parent=1 // pred_fallthru
      _
    %v88 = vld [vmem:[#allocation2] sm:$0xff]
    %v89 = vld [vmem:[#allocation2 + $0x8] sm:$0xff]
    %v90 = vld [vmem:[#allocation7] sm:$0xff]
    %v91 = vld [vmem:[#allocation7 + $0x8] sm:$0xff]
    %v92 = vld [vmem:[#allocation7 + $0x10] sm:$0xff]
    %v93 = vld [vmem:[#allocation7 + $0x18] sm:$0xff]
    %v94 = vld [vmem:[#allocation7 + $0x20] sm:$0xff]
    %v95 = vld [vmem:[#allocation7 + $0x28] sm:$0xff]
    %v96 = vld [vmem:[#allocation7 + $0x30] sm:$0xff]
    %v97 = vld [vmem:[#allocation7 + $0x38] sm:$0xff]
    %v98 = vld [vmem:[#allocation7 + $0x40] sm:$0xff]
    %v99 = vld [vmem:[#allocation7 + $0x48] sm:$0xff]
    %v100 = vld [vmem:[#allocation7 + $0x50] sm:$0xff]
    %v101 = vld [vmem:[#allocation7 + $0x58] sm:$0xff]
    %v102 = vld [vmem:[#allocation7 + $0x60] sm:$0xff]
    %v103 = vld [vmem:[#allocation7 + $0x68] sm:$0xff]
    %v104 = vld [vmem:[#allocation7 + $0x70] sm:$0xff]
    %v105 = vld [vmem:[#allocation7 + $0x78] sm:$0xff]
    %106 = vmatpush.msra.mxu0 %v105
    %107 = vmatpush.msra.mxu0 %v104
    %108 = vmatpush.msra.mxu0 %v103
    %109 = vmatpush.msra.mxu0 %v102
    %110 = vmatpush.msra.mxu0 %v101
    %111 = vmatpush.msra.mxu0 %v100
    %112 = vmatpush.msra.mxu0 %v99
    %113 = vmatpush.msra.mxu0 %v98
    %114 = vmatpush.msra.mxu0 %v97
    %115 = vmatpush.msra.mxu0 %v96
    %116 = vmatpush.msra.mxu0 %v95
    %117 = vmatpush.msra.mxu0 %v94
    %118 = vmatpush.msra.mxu0 %v93
    %119 = vmatpush.msra.mxu0 %v92
    %120 = vmatpush.msra.mxu0 %v91
    %121 = vmatpush.msra.mxu0 %v90
    %122 = vmatmul.f32.gmra.mxu0 %v88
    %v123 = vpop.f32.mrf.mxu0
    %v124 = vadd.f32 0.0, %v123
    %125 = vmatmul.f32.gmra.mxu0 %v89
    %v126 = vpop.f32.mrf.mxu0
    %v127 = vadd.f32 0.0, %v126
    %128 = vdwg.mxu0
    %v129 = vld [vmem:[#allocation8] sm:$0xff]
    %v130 = vld [vmem:[#allocation8 + $0x8] sm:$0xff]
    %v131 = vld [vmem:[#allocation8 + $0x10] sm:$0xff]
    %v132 = vld [vmem:[#allocation8 + $0x18] sm:$0xff]
    %v133 = vld [vmem:[#allocation8 + $0x20] sm:$0xff]
    %v134 = vld [vmem:[#allocation8 + $0x28] sm:$0xff]
    %v135 = vld [vmem:[#allocation8 + $0x30] sm:$0xff]
    %v136 = vld [vmem:[#allocation8 + $0x38] sm:$0xff]
    %v137 = vld [vmem:[#allocation8 + $0x40] sm:$0xff]
    %v138 = vld [vmem:[#allocation8 + $0x48] sm:$0xff]
    %v139 = vld [vmem:[#allocation8 + $0x50] sm:$0xff]
    %v140 = vld [vmem:[#allocation8 + $0x58] sm:$0xff]
    %v141 = vld [vmem:[#allocation8 + $0x60] sm:$0xff]
    %v142 = vld [vmem:[#allocation8 + $0x68] sm:$0xff]
    %v143 = vld [vmem:[#allocation8 + $0x70] sm:$0xff]
    %v144 = vld [vmem:[#allocation8 + $0x78] sm:$0xff]
    %v145 = vld [vmem:[%s4] sm:$0x1]
    %v147 = vperm.slane %v145, 0
    %149 = vmatpush.msra.mxu0 %v144
    %150 = vmatpush.msra.mxu0 %v143
    %151 = vmatpush.msra.mxu0 %v142
    %152 = vmatpush.msra.mxu0 %v141
    %153 = vmatpush.msra.mxu0 %v140
    %154 = vmatpush.msra.mxu0 %v139
    %155 = vmatpush.msra.mxu0 %v138
    %156 = vmatpush.msra.mxu0 %v137
    %157 = vmatpush.msra.mxu0 %v136
    %158 = vmatpush.msra.mxu0 %v135
    %159 = vmatpush.msra.mxu0 %v134
    %160 = vmatpush.msra.mxu0 %v133
    %161 = vmatpush.msra.mxu0 %v132
    %162 = vmatpush.msra.mxu0 %v131
    %163 = vmatpush.msra.mxu0 %v130
    %164 = vmatpush.msra.mxu0 %v129
    %165 = vmatmul.f32.gmra.mxu0 %v124
    %v166 = vpop.f32.mrf.mxu0
    %v167 = vadd.f32 %v147, %v166
    %168 = vmatmul.f32.gmra.mxu0 %v127
    %v169 = vpop.f32.mrf.mxu0
    %v170 = vadd.f32 %v147, %v169
    %171 = vdwg.mxu0
    %v172 = vtanh.pop %v167
    %v173 = vtanh.pop %v170
    %174 = vst [vmem:[#allocation10] sm:$0xff] %v172
    %175 = vst [vmem:[#allocation10 + $0x8] sm:$0xff] %v173
    %v176 = vld [vmem:[#allocation5] sm:$0xff]
    %v177 = vld [vmem:[#allocation5 + $0x8] sm:$0xff]
    %s178 = scalar_lea.vmem [#allocation7], 128
    %v179 = vld [vmem:[%s178] sm:$0xff]
    %v180 = vld [vmem:[%s178 + $0x8] sm:$0xff]
    %v181 = vld [vmem:[%s178 + $0x10] sm:$0xff]
    %v182 = vld [vmem:[%s178 + $0x18] sm:$0xff]
    %v183 = vld [vmem:[%s178 + $0x20] sm:$0xff]
    %v184 = vld [vmem:[%s178 + $0x28] sm:$0xff]
    %v185 = vld [vmem:[%s178 + $0x30] sm:$0xff]
    %v186 = vld [vmem:[%s178 + $0x38] sm:$0xff]
    %v187 = vld [vmem:[%s178 + $0x40] sm:$0xff]
    %v188 = vld [vmem:[%s178 + $0x48] sm:$0xff]
    %v189 = vld [vmem:[%s178 + $0x50] sm:$0xff]
    %v190 = vld [vmem:[%s178 + $0x58] sm:$0xff]
    %v191 = vld [vmem:[%s178 + $0x60] sm:$0xff]
    %v192 = vld [vmem:[%s178 + $0x68] sm:$0xff]
    %v193 = vld [vmem:[%s178 + $0x70] sm:$0xff]
    %v194 = vld [vmem:[%s178 + $0x78] sm:$0xff]
    %195 = vmatpush.msra.mxu0 %v194
    %196 = vmatpush.msra.mxu0 %v193
    %197 = vmatpush.msra.mxu0 %v192
    %198 = vmatpush.msra.mxu0 %v191
    %199 = vmatpush.msra.mxu0 %v190
    %200 = vmatpush.msra.mxu0 %v189
    %201 = vmatpush.msra.mxu0 %v188
    %202 = vmatpush.msra.mxu0 %v187
    %203 = vmatpush.msra.mxu0 %v186
    %204 = vmatpush.msra.mxu0 %v185
    %205 = vmatpush.msra.mxu0 %v184
    %206 = vmatpush.msra.mxu0 %v183
    %207 = vmatpush.msra.mxu0 %v182
    %208 = vmatpush.msra.mxu0 %v181
    %209 = vmatpush.msra.mxu0 %v180
    %210 = vmatpush.msra.mxu0 %v179
    %211 = vmatmul.f32.gmra.mxu0 %v176
    %v212 = vpop.f32.mrf.mxu0
    %v213 = vadd.f32 0.0, %v212
    %214 = vmatmul.f32.gmra.mxu0 %v177
    %v215 = vpop.f32.mrf.mxu0
    %v216 = vadd.f32 0.0, %v215
    %217 = vdwg.mxu0
    %s218 = scalar_lea.vmem [#allocation8], 128
    %v219 = vld [vmem:[%s218] sm:$0xff]
    %v220 = vld [vmem:[%s218 + $0x8] sm:$0xff]
    %v221 = vld [vmem:[%s218 + $0x10] sm:$0xff]
    %v222 = vld [vmem:[%s218 + $0x18] sm:$0xff]
    %v223 = vld [vmem:[%s218 + $0x20] sm:$0xff]
    %v224 = vld [vmem:[%s218 + $0x28] sm:$0xff]
    %v225 = vld [vmem:[%s218 + $0x30] sm:$0xff]
    %v226 = vld [vmem:[%s218 + $0x38] sm:$0xff]
    %v227 = vld [vmem:[%s218 + $0x40] sm:$0xff]
    %v228 = vld [vmem:[%s218 + $0x48] sm:$0xff]
    %v229 = vld [vmem:[%s218 + $0x50] sm:$0xff]
    %v230 = vld [vmem:[%s218 + $0x58] sm:$0xff]
    %v231 = vld [vmem:[%s218 + $0x60] sm:$0xff]
    %v232 = vld [vmem:[%s218 + $0x68] sm:$0xff]
    %v233 = vld [vmem:[%s218 + $0x70] sm:$0xff]
    %v234 = vld [vmem:[%s218 + $0x78] sm:$0xff]
    %s235 = scalar_lea.vmem %s4, 1
    %v236 = vld [vmem:[%s235] sm:$0x1]
    %v238 = vperm.slane %v236, 0
    %240 = vmatpush.msra.mxu0 %v234
    %241 = vmatpush.msra.mxu0 %v233
    %242 = vmatpush.msra.mxu0 %v232
    %243 = vmatpush.msra.mxu0 %v231
    %244 = vmatpush.msra.mxu0 %v230
    %245 = vmatpush.msra.mxu0 %v229
    %246 = vmatpush.msra.mxu0 %v228
    %247 = vmatpush.msra.mxu0 %v227
    %248 = vmatpush.msra.mxu0 %v226
    %249 = vmatpush.msra.mxu0 %v225
    %250 = vmatpush.msra.mxu0 %v224
    %251 = vmatpush.msra.mxu0 %v223
    %252 = vmatpush.msra.mxu0 %v222
    %253 = vmatpush.msra.mxu0 %v221
    %254 = vmatpush.msra.mxu0 %v220
    %255 = vmatpush.msra.mxu0 %v219
    %256 = vmatmul.f32.gmra.mxu0 %v213
    %v257 = vpop.f32.mrf.mxu0
    %v258 = vadd.f32 %v238, %v257
    %259 = vmatmul.f32.gmra.mxu0 %v216
    %v260 = vpop.f32.mrf.mxu0
    %v261 = vadd.f32 %v238, %v260
    %262 = vdwg.mxu0
    %v263 = vtanh.pop %v258
    %v264 = vtanh.pop %v261
    %265 = vst [vmem:[#allocation11] sm:$0xff] %v263
    %266 = vst [vmem:[#allocation11 + $0x8] sm:$0xff] %v264
    %267 = vmatpush.xpose.msra.mxu0 0.0
    %268 = vmatpush.xpose.msra.mxu0 0.0
    %269 = vmatpush.xpose.msra.mxu0 0.0
    %270 = vmatpush.xpose.msra.mxu0 0.0
    %271 = vmatpush.xpose.msra.mxu0 0.0
    %272 = vmatpush.xpose.msra.mxu0 0.0
    %273 = vmatpush.xpose.msra.mxu0 0.0
    %274 = vmatpush.xpose.msra.mxu0 0.0
    %275 = vmatpush.xpose.msra.mxu0 0.0
    %276 = vmatpush.xpose.msra.mxu0 0.0
    %277 = vmatpush.xpose.msra.mxu0 0.0
    %278 = vmatpush.xpose.msra.mxu0 0.0
    %279 = vmatpush.xpose.msra.mxu0 0.0
    %280 = vmatpush.xpose.msra.mxu0 0.0
    %281 = vmatpush.xpose.msra.mxu0 %v173
    %282 = vmatpush.xpose.msra.mxu0 %v172
    %283 = vmatmul.f32.gmra.mxu0 %v263
    %v284 = vpop.f32.mrf.mxu0
    %v285 = vadd.f32 0.0, %v284
    %286 = vmatmul.f32.gmra.mxu0 %v264
    %v287 = vpop.f32.mrf.mxu0
    %v288 = vadd.f32 0.0, %v287
    %289 = vdwg.mxu0
    %v290 = vmul.f32 %v263, %v172
    %v291 = vmul.f32 %v264, %v173
    %292 = vadd.xlane.f32.xlu0 %v290
    %v293 = vpop.xlane.xlu0 %292
    %294 = vadd.xlane.f32.xlu0 %v291
    %v295 = vpop.xlane.xlu0 %294
    %vm296 = vcmask 130048
    %v297 = vsel %vm296, %v285, -inf
    %298 = vmax.xlane.f32.xlu0 %v297
    %v299 = vpop.xlane.xlu0 %298
    %v300 = vsel %vm296, %v288, -inf
    %301 = vmax.xlane.f32.xlu0 %v300
    %v302 = vpop.xlane.xlu0 %301
    %v303 = vsub.f32 %v285, %v299
    %v304 = vsub.f32 %v288, %v302
    %v305 = vmul.f32 %v303, 1.442695
    %v306 = vpow.pop %v305
    %v307 = vmul.f32 %v304, 1.442695
    %v308 = vpow.pop %v307
    %v309 = vsel %vm296, %v306, 0.0
    %310 = vadd.xlane.f32.xlu0 %v309
    %v311 = vpop.xlane.xlu0 %310
    %v312 = vsel %vm296, %v308, 0.0
    %313 = vadd.xlane.f32.xlu0 %v312
    %v314 = vpop.xlane.xlu0 %313
    %v315 = vlog2.pop %v311
    %v316 = vmul.f32 %v315, 0.6931472
    %v317 = vlog2.pop %v314
    %v318 = vmul.f32 %v317, 0.6931472
    %v319 = vadd.f32 %v299, %v316
    %v320 = vadd.f32 %v302, %v318
    %v321 = vsub.f32 %v319, %v293
    %v322 = vsub.f32 %v320, %v295
    %vm323 = vcmask 7168
    %v324 = vsel %vm323, %v321, 0.0
    %v325 = vsel %vm323, %v322, 0.0
    %v326 = vadd.f32 %v324, %v325
    %327 = vadd.xlane.f32.xlu0 %v326
    %v328 = vpop.xlane.xlu0 %327
    %v329 = vrot.slane %v328, 4
    %v330 = vadd.f32 %v328, %v329
    %v331 = vrot.slane %v330, 2
    %v332 = vadd.f32 %v330, %v331
    %v333 = vrot.slane %v332, 1
    %v334 = vadd.f32 %v332, %v333
    %s335 = vtos %v334
    %v336 = vstv %s335
    %v337 = vrcp.pop 16.0
    %v338 = vmul.f32 16.0, %v337
    %v339 = vsub.f32 1.0, %v338
    %v340 = vmul.f32 %v337, %v339
    %v341 = vadd.f32 %v337, %v340
    %vm342 = vweird.f32 %v337
    %v343 = vsel %vm342, %v337, %v341
    %v344 = vmul.f32 %v336, %v343
    %vm345 = vcmask 0
    %346 = vst.msk [vmem:[#allocation13] sm:$0x1] %vm345, %v344
    // Predicated region
    $region38: #{tpu_custom_call.1} parent=1 // pred_check
      _
    $region39: #{tpu_custom_call.1} parent=1 // pred_check_branch
      %348 = sbr.rel (0) target = $region41
    $region40: #{tpu_custom_call.1} parent=1 // pred_region
      %350 = vsyncadd [#allocation4], 0
      %s351 = sshll.u32 [#allocation10], 4
      %s352 = int_to_ptr.vmem [resolvable:$true] %s351
      %s353 = sshll.u32 %s5, 4
      %s354 = int_to_ptr.hbm [resolvable:$true] %s353
      %359 = dma.vmem_to_hbm [thread:$0]  %s352, 256, %s354, [#allocation4], 128, 128, 8
    $region41: #{tpu_custom_call.1} parent=1 // pred_fallthru
      _
    // Predicated region
    $region42: #{tpu_custom_call.1} parent=1 // pred_check
      _
    $region43: #{tpu_custom_call.1} parent=1 // pred_check_branch
      %361 = sbr.rel (0) target = $region45
    $region44: #{tpu_custom_call.1} parent=1 // pred_region
      %363 = vsyncadd [#allocation12], 0
      %s364 = sshll.u32 [#allocation11], 4
      %s365 = int_to_ptr.vmem [resolvable:$true] %s364
      %s366 = sshll.u32 %s6, 4
      %s367 = int_to_ptr.hbm [resolvable:$true] %s366
      %372 = dma.vmem_to_hbm [thread:$0]  %s365, 256, %s367, [#allocation12], 128, 128, 8
    $region45: #{tpu_custom_call.1} parent=1 // pred_fallthru
      _
    // Predicated region
    $region46: #{tpu_custom_call.1} parent=1 // pred_check
      _
    $region47: #{tpu_custom_call.1} parent=1 // pred_check_branch
      %374 = sbr.rel (0) target = $region49
    $region48: #{tpu_custom_call.1} parent=1 // pred_region
      %376 = vsyncadd [#allocation12], 0
      %s378 = sshll.u32 [#allocation13], 4
      %s379 = int_to_ptr.vmem [resolvable:$true] %s378
      %s380 = sshll.u32 %s7, 4
      %s381 = int_to_ptr.hbm [resolvable:$true] %s380
      %383 = dma.vmem_to_hbm [thread:$0]  %s379, 16, %s381, [#allocation12]
    $region49: #{tpu_custom_call.1} parent=1 // pred_fallthru
      _
    // Predicated region
    $region50: #{tpu_custom_call.1} parent=1 // pred_check
      _
    $region51: #{tpu_custom_call.1} parent=1 // pred_check_branch
      %385 = sbr.rel (0) target = $region53
    $region52: #{tpu_custom_call.1} parent=1 // pred_region
      %387 = dma.done [#allocation4], 256
    $region53: #{tpu_custom_call.1} parent=1 // pred_fallthru
      _
    // Predicated region
    $region54: #{tpu_custom_call.1} parent=1 // pred_check
      _
    $region55: #{tpu_custom_call.1} parent=1 // pred_check_branch
      %389 = sbr.rel (0) target = $region57
    $region56: #{tpu_custom_call.1} parent=1 // pred_region
      %391 = dma.done [#allocation12], 256
    $region57: #{tpu_custom_call.1} parent=1 // pred_fallthru
      _
    // Predicated region
    $region58: #{tpu_custom_call.1} parent=1 // pred_check
      _
    $region59: #{tpu_custom_call.1} parent=1 // pred_check_branch
      %393 = sbr.rel (0) target = $region61
    $region60: #{tpu_custom_call.1} parent=1 // pred_region
      %395 = dma.done [#allocation12], 16
    $region61: #{tpu_custom_call.1} parent=1 // pred_fallthru
      _
    %396 = vsyncpa [#allocation3], 1
    %397 = vsyncpa [#allocation6], 1
    %398 = vsyncpa [#allocation9], 1
    %399 = vsyncpa [#allocation4], 1
    %400 = vsyncpa [#allocation12], 1

</llo_original>
